<compile_context>
chip_gen: v5e
topology: v5e:2x2
jax: 0.10.0
libtpu: 0.0.40
codegen_flags: <defaults>
</compile_context>

<pallas_src>
import functools

import jax
import jax.numpy as jnp
from jax.experimental import pallas as pl
from jax.experimental.pallas import tpu as pltpu


def simple_fusion_kernel(xi_ref, xj_ref,
                         ws1_ref, bs1_ref, ws2_ref, bs2_ref,
                         we1_ref, be1_ref, we2_ref, be2_ref,
                         wf1a_ref, wf1b_ref, bf1_ref, wf2_ref, bf2_ref,
                         out_ref, *, compute_dtype):
    f32 = jnp.float32
    cdt = compute_dtype                               # MXU operand dtype (bf16 or f32)

    xi = xi_ref[0].astype(cdt)                        # (ti, D) rows of the pairwise grid
    xj = xj_ref[0].astype(cdt)                        # (tj, D) cols of the pairwise grid

    # --- start_linear on the row tile: Linear -> ReLU -> Linear -------------------
    h = jnp.dot(xi, ws1_ref[...], preferred_element_type=f32) + bs1_ref[...]
    start = jnp.dot(jnp.maximum(h, 0.0).astype(cdt), ws2_ref[...],
                    preferred_element_type=f32) + bs2_ref[...]            # (ti, D) f32

    # --- end_linear on the col tile ------------------------------------------------
    h = jnp.dot(xj, we1_ref[...], preferred_element_type=f32) + be1_ref[...]
    end = jnp.dot(jnp.maximum(h, 0.0).astype(cdt), we2_ref[...],
                  preferred_element_type=f32) + be2_ref[...]              # (tj, D) f32

    ti, D = start.shape
    tj = end.shape[0]

    # --- final_linear layer 1: hoisted additive branch + per-tile mul branch -------
    sa = jnp.dot(start.astype(cdt), wf1a_ref[...],
                 preferred_element_type=f32) + bf1_ref[...]               # (ti, D), bf1 folded in
    ea = jnp.dot(end.astype(cdt), wf1a_ref[...],
                 preferred_element_type=f32)                              # (tj, D)

    mul = (start[:, None, :] * end[None, :, :]).reshape(ti * tj, D)       # (ti*tj, D) f32
    hb = jnp.dot(mul.astype(cdt), wf1b_ref[...],
                 preferred_element_type=f32)                              # (ti*tj, D) f32
    hidden = jnp.maximum(hb.reshape(ti, tj, D)
                         + sa[:, None, :] + ea[None, :, :], 0.0)          # (ti, tj, D) f32

    # --- final_linear layer 2 -------------------------------------------------------
    out = jnp.dot(hidden.reshape(ti * tj, D).astype(cdt), wf2_ref[...],
                  preferred_element_type=f32) + bf2_ref[...]              # (ti*tj, T) f32

    # TODO(synk): with T < 128 these stores are masked (not lane-dense); packing the
    # block as (ti, tj*T) would need a sublane->lane relayout that Mosaic may not lower,
    # so the straightforward (ti, tj, T) store is kept.
    out_ref[0] = out.reshape(ti, tj, -1).astype(out_ref.dtype)


# parameter order as passed to the kernel (after wrapper-side preprocessing)
W_ORDER = ['ws1', 'bs1', 'ws2', 'bs2',
           'we1', 'be1', 'we2', 'be2',
           'wf1a', 'wf1b', 'bf1', 'wf2', 'bf2']


def prepare_params(params, mxu_dtype):
    """Split Wf1 into its add/mul halves and cast matmul weights to the MXU dtype.
    Biases stay f32 (added after f32 accumulation)."""
    D = params['wf1'].shape[1]
    f32 = jnp.float32
    return {
        'ws1': params['ws1'].astype(mxu_dtype), 'bs1': params['bs1'].astype(f32),
        'ws2': params['ws2'].astype(mxu_dtype), 'bs2': params['bs2'].astype(f32),
        'we1': params['we1'].astype(mxu_dtype), 'be1': params['be1'].astype(f32),
        'we2': params['we2'].astype(mxu_dtype), 'be2': params['be2'].astype(f32),
        'wf1a': params['wf1'][:D, :].astype(mxu_dtype),   # multiplies (start + end)
        'wf1b': params['wf1'][D:, :].astype(mxu_dtype),   # multiplies (start * end)
        'bf1': params['bf1'].astype(f32),
        'wf2': params['wf2'].astype(mxu_dtype), 'bf2': params['bf2'].astype(f32),
    }


def simple_fusion(x, params, *, tile_i=None, tile_j=None, mxu_dtype=jnp.bfloat16):
    B, L, D = x.shape
    T = params['wf2'].shape[1]

    # Default 128x128 fusion tile (clamped to L). Per-tile VMEM for D=32/T=16 at 128x128
    # is a few MiB, well under the 48 MiB budget below on every generation.
    ti = min(tile_i or 128, L)
    tj = min(tile_j or 128, L)
    assert L % ti == 0 and L % tj == 0, "sequence length must be divisible by the tile size"

    p = prepare_params(params, mxu_dtype)

    in_specs = [
        pl.BlockSpec((1, ti, D), lambda b, i, j: (b, i, 0)),   # x row tile -> start path
        pl.BlockSpec((1, tj, D), lambda b, i, j: (b, j, 0)),   # x col tile -> end path
    ]
    args = [x, x]
    for name in W_ORDER:
        w = p[name]
        in_specs.append(pl.BlockSpec(w.shape, lambda b, i, j, n=w.ndim: (0,) * n))
        args.append(w)

    kernel = functools.partial(simple_fusion_kernel, compute_dtype=mxu_dtype)

    return pl.pallas_call(
        kernel,
        out_shape=jax.ShapeDtypeStruct((B, L, L, T), x.dtype),
        grid=(B, L // ti, L // tj),
        in_specs=in_specs,
        out_specs=pl.BlockSpec((1, ti, tj, T), lambda b, i, j: (b, i, j, 0)),
        compiler_params=pltpu.CompilerParams(
            dimension_semantics=("parallel", "parallel", "parallel"),
            vmem_limit_bytes=48 * 1024 * 1024,
        ),
    )(*args)


def init_params(key, dim, target_dim):
    """Deterministic init mimicking nn.Linear's U(-1/sqrt(fan_in), 1/sqrt(fan_in)).
    Weights stored as (in, out) so the math is x @ W + b."""
    params = {}

    def linear(key, fan_in, fan_out):
        kw, kb = jax.random.split(key)
        bound = 1.0 / jnp.sqrt(fan_in)
        w = jax.random.uniform(kw, (fan_in, fan_out), jnp.float32, -bound, bound)
        b = jax.random.uniform(kb, (1, fan_out), jnp.float32, -bound, bound)
        return w, b

    keys = jax.random.split(key, 6)
    params['ws1'], params['bs1'] = linear(keys[0], dim, dim)
    params['ws2'], params['bs2'] = linear(keys[1], dim, dim)
    params['we1'], params['be1'] = linear(keys[2], dim, dim)
    params['we2'], params['be2'] = linear(keys[3], dim, dim)
    params['wf1'], params['bf1'] = linear(keys[4], 2 * dim, dim)
    params['wf2'], params['bf2'] = linear(keys[5], dim, target_dim)
    return params


def ref_forward(x, p):
    """Pure-JAX f32 reference mirroring the PyTorch forward."""
    def mlp(z, w1, b1, w2, b2):
        return jnp.maximum(z @ w1 + b1[0], 0.0) @ w2 + b2[0]

    start = mlp(x, p['ws1'], p['bs1'], p['ws2'], p['bs2'])[:, :, None, :]   # (B,L,1,D)
    end = mlp(x, p['we1'], p['be1'], p['we2'], p['be2'])[:, None, :, :]     # (B,1,L,D)
    cat = jnp.concatenate([start + end, start * end], axis=-1)              # (B,L,L,2D)
    h = jnp.maximum(cat @ p['wf1'] + p['bf1'][0], 0.0)
    return h @ p['wf2'] + p['bf2'][0]


if __name__ == "__main__":
    B, L, dim, target_dim = 2, 8, 32, 16

    key = jax.random.PRNGKey(0)
    kx, kp = jax.random.split(key)
    x = jax.random.normal(kx, (B, L, dim), jnp.float32)
    params = init_params(kp, dim, target_dim)

    ref = ref_forward(x, params)

    # 1) exact-math path (f32 MXU operands): tight check against the f32 reference.
    out_f32 = jax.block_until_ready(simple_fusion(x, params, mxu_dtype=jnp.float32))
    assert out_f32.shape == (B, L, L, target_dim), out_f32.shape
    err_f32 = float(jnp.max(jnp.abs(out_f32 - ref)))
    assert jnp.allclose(out_f32, ref, atol=2e-4, rtol=2e-4), err_f32

    # 2) default fast path (bf16 MXU operands, f32 accumulation): looser tolerance
    #    sized for bf16 operand rounding.
    out = jax.block_until_ready(simple_fusion(x, params))
    assert out.shape == (B, L, L, target_dim), out.shape
    err_bf16 = float(jnp.max(jnp.abs(out - ref)))
    assert jnp.allclose(out, ref, atol=1e-1, rtol=5e-2), err_bf16

    print("KERNEL_OK")
</pallas_src>

<mosaic_0001>
module attributes {stable_mosaic.version = 11 : i64} {
  func.func @simple_fusion_kernel(%arg0: i32, %arg1: i32, %arg2: i32, %arg3: memref<1x8x32xf32, #tpu.memory_space<vmem>>, %arg4: memref<1x8x32xf32, #tpu.memory_space<vmem>>, %arg5: memref<32x32xf32, #tpu.memory_space<vmem>>, %arg6: memref<1x32xf32, #tpu.memory_space<vmem>>, %arg7: memref<32x32xf32, #tpu.memory_space<vmem>>, %arg8: memref<1x32xf32, #tpu.memory_space<vmem>>, %arg9: memref<32x32xf32, #tpu.memory_space<vmem>>, %arg10: memref<1x32xf32, #tpu.memory_space<vmem>>, %arg11: memref<32x32xf32, #tpu.memory_space<vmem>>, %arg12: memref<1x32xf32, #tpu.memory_space<vmem>>, %arg13: memref<32x32xf32, #tpu.memory_space<vmem>>, %arg14: memref<32x32xf32, #tpu.memory_space<vmem>>, %arg15: memref<1x32xf32, #tpu.memory_space<vmem>>, %arg16: memref<32x16xf32, #tpu.memory_space<vmem>>, %arg17: memref<1x16xf32, #tpu.memory_space<vmem>>, %arg18: memref<1x8x8x16xf32, #tpu.memory_space<vmem>>) attributes {dimension_semantics = [#tpu.dimension_semantics<parallel>, #tpu.dimension_semantics<parallel>, #tpu.dimension_semantics<parallel>], iteration_bounds = array<i64: 2, 1, 1>, scalar_prefetch = 0 : i64, scratch_operands = 0 : i64, tpu.core_type = #tpu.core_type<tc>, window_params = [{transform_indices = @transform_0, window_bounds = array<i64: 1, 8, 32>}, {transform_indices = @transform_1, window_bounds = array<i64: 1, 8, 32>}, {pipeline_mode = #tpu.pipeline_mode<synchronous>, transform_indices = @transform_2, window_bounds = array<i64: 32, 32>}, {pipeline_mode = #tpu.pipeline_mode<synchronous>, transform_indices = @transform_3, window_bounds = array<i64: 1, 32>}, {pipeline_mode = #tpu.pipeline_mode<synchronous>, transform_indices = @transform_4, window_bounds = array<i64: 32, 32>}, {pipeline_mode = #tpu.pipeline_mode<synchronous>, transform_indices = @transform_5, window_bounds = array<i64: 1, 32>}, {pipeline_mode = #tpu.pipeline_mode<synchronous>, transform_indices = @transform_6, window_bounds = array<i64: 32, 32>}, {pipeline_mode = #tpu.pipeline_mode<synchronous>, transform_indices = @transform_7, window_bounds = array<i64: 1, 32>}, {pipeline_mode = #tpu.pipeline_mode<synchronous>, transform_indices = @transform_8, window_bounds = array<i64: 32, 32>}, {pipeline_mode = #tpu.pipeline_mode<synchronous>, transform_indices = @transform_9, window_bounds = array<i64: 1, 32>}, {pipeline_mode = #tpu.pipeline_mode<synchronous>, transform_indices = @transform_10, window_bounds = array<i64: 32, 32>}, {pipeline_mode = #tpu.pipeline_mode<synchronous>, transform_indices = @transform_11, window_bounds = array<i64: 32, 32>}, {pipeline_mode = #tpu.pipeline_mode<synchronous>, transform_indices = @transform_12, window_bounds = array<i64: 1, 32>}, {pipeline_mode = #tpu.pipeline_mode<synchronous>, transform_indices = @transform_13, window_bounds = array<i64: 32, 16>}, {pipeline_mode = #tpu.pipeline_mode<synchronous>, transform_indices = @transform_14, window_bounds = array<i64: 1, 16>}, {transform_indices = @transform_15, window_bounds = array<i64: 1, 8, 8, 16>}]} {
    %c0 = arith.constant 0 : index
    %c0_0 = arith.constant 0 : index
    %c0_1 = arith.constant 0 : index
    %0 = vector.load %arg3[%c0, %c0_0, %c0_1] : memref<1x8x32xf32, #tpu.memory_space<vmem>>, vector<1x8x32xf32>
    %1 = vector.shape_cast %0 : vector<1x8x32xf32> to vector<8x32xf32>
    %c0_2 = arith.constant 0 : index
    %c0_3 = arith.constant 0 : index
    %c0_4 = arith.constant 0 : index
    %2 = vector.load %arg4[%c0_2, %c0_3, %c0_4] : memref<1x8x32xf32, #tpu.memory_space<vmem>>, vector<1x8x32xf32>
    %3 = vector.shape_cast %2 : vector<1x8x32xf32> to vector<8x32xf32>
    %c0_5 = arith.constant 0 : index
    %c0_6 = arith.constant 0 : index
    %4 = vector.load %arg5[%c0_5, %c0_6] : memref<32x32xf32, #tpu.memory_space<vmem>>, vector<32x32xf32>
    %cst = arith.constant dense<0.000000e+00> : vector<8x32xf32>
    %5 = tpu.matmul %1, %4, %cst {dimension_numbers = #tpu.dot_dimension_numbers<[1], [0], [0], [1], [0, 0, 1, 1], [], []>} : vector<8x32xf32>, vector<32x32xf32>, vector<8x32xf32> -> vector<8x32xf32>
    %c0_7 = arith.constant 0 : index
    %c0_8 = arith.constant 0 : index
    %6 = vector.load %arg6[%c0_7, %c0_8] : memref<1x32xf32, #tpu.memory_space<vmem>>, vector<1x32xf32>
    %7 = vector.broadcast %6 : vector<1x32xf32> to vector<8x32xf32>
    %8 = arith.addf %5, %7 : vector<8x32xf32>
    %cst_9 = arith.constant 0.000000e+00 : f32
    %9 = vector.broadcast %cst_9 : f32 to vector<8x32xf32>
    %10 = arith.maximumf %8, %9 : vector<8x32xf32>
    %c0_10 = arith.constant 0 : index
    %c0_11 = arith.constant 0 : index
    %11 = vector.load %arg7[%c0_10, %c0_11] : memref<32x32xf32, #tpu.memory_space<vmem>>, vector<32x32xf32>
    %cst_12 = arith.constant dense<0.000000e+00> : vector<8x32xf32>
    %12 = tpu.matmul %10, %11, %cst_12 {dimension_numbers = #tpu.dot_dimension_numbers<[1], [0], [0], [1], [0, 0, 1, 1], [], []>} : vector<8x32xf32>, vector<32x32xf32>, vector<8x32xf32> -> vector<8x32xf32>
    %c0_13 = arith.constant 0 : index
    %c0_14 = arith.constant 0 : index
    %13 = vector.load %arg8[%c0_13, %c0_14] : memref<1x32xf32, #tpu.memory_space<vmem>>, vector<1x32xf32>
    %14 = vector.broadcast %13 : vector<1x32xf32> to vector<8x32xf32>
    %15 = arith.addf %12, %14 : vector<8x32xf32>
    %c0_15 = arith.constant 0 : index
    %c0_16 = arith.constant 0 : index
    %16 = vector.load %arg9[%c0_15, %c0_16] : memref<32x32xf32, #tpu.memory_space<vmem>>, vector<32x32xf32>
    %cst_17 = arith.constant dense<0.000000e+00> : vector<8x32xf32>
    %17 = tpu.matmul %3, %16, %cst_17 {dimension_numbers = #tpu.dot_dimension_numbers<[1], [0], [0], [1], [0, 0, 1, 1], [], []>} : vector<8x32xf32>, vector<32x32xf32>, vector<8x32xf32> -> vector<8x32xf32>
    %c0_18 = arith.constant 0 : index
    %c0_19 = arith.constant 0 : index
    %18 = vector.load %arg10[%c0_18, %c0_19] : memref<1x32xf32, #tpu.memory_space<vmem>>, vector<1x32xf32>
    %19 = vector.broadcast %18 : vector<1x32xf32> to vector<8x32xf32>
    %20 = arith.addf %17, %19 : vector<8x32xf32>
    %cst_20 = arith.constant 0.000000e+00 : f32
    %21 = vector.broadcast %cst_20 : f32 to vector<8x32xf32>
    %22 = arith.maximumf %20, %21 : vector<8x32xf32>
    %c0_21 = arith.constant 0 : index
    %c0_22 = arith.constant 0 : index
    %23 = vector.load %arg11[%c0_21, %c0_22] : memref<32x32xf32, #tpu.memory_space<vmem>>, vector<32x32xf32>
    %cst_23 = arith.constant dense<0.000000e+00> : vector<8x32xf32>
    %24 = tpu.matmul %22, %23, %cst_23 {dimension_numbers = #tpu.dot_dimension_numbers<[1], [0], [0], [1], [0, 0, 1, 1], [], []>} : vector<8x32xf32>, vector<32x32xf32>, vector<8x32xf32> -> vector<8x32xf32>
    %c0_24 = arith.constant 0 : index
    %c0_25 = arith.constant 0 : index
    %25 = vector.load %arg12[%c0_24, %c0_25] : memref<1x32xf32, #tpu.memory_space<vmem>>, vector<1x32xf32>
    %26 = vector.broadcast %25 : vector<1x32xf32> to vector<8x32xf32>
    %27 = arith.addf %24, %26 : vector<8x32xf32>
    %c0_26 = arith.constant 0 : index
    %c0_27 = arith.constant 0 : index
    %28 = vector.load %arg13[%c0_26, %c0_27] : memref<32x32xf32, #tpu.memory_space<vmem>>, vector<32x32xf32>
    %cst_28 = arith.constant dense<0.000000e+00> : vector<8x32xf32>
    %29 = tpu.matmul %15, %28, %cst_28 {dimension_numbers = #tpu.dot_dimension_numbers<[1], [0], [0], [1], [0, 0, 1, 1], [], []>} : vector<8x32xf32>, vector<32x32xf32>, vector<8x32xf32> -> vector<8x32xf32>
    %c0_29 = arith.constant 0 : index
    %c0_30 = arith.constant 0 : index
    %30 = vector.load %arg15[%c0_29, %c0_30] : memref<1x32xf32, #tpu.memory_space<vmem>>, vector<1x32xf32>
    %31 = vector.broadcast %30 : vector<1x32xf32> to vector<8x32xf32>
    %32 = arith.addf %29, %31 : vector<8x32xf32>
    %c0_31 = arith.constant 0 : index
    %c0_32 = arith.constant 0 : index
    %33 = vector.load %arg13[%c0_31, %c0_32] : memref<32x32xf32, #tpu.memory_space<vmem>>, vector<32x32xf32>
    %cst_33 = arith.constant dense<0.000000e+00> : vector<8x32xf32>
    %34 = tpu.matmul %27, %33, %cst_33 {dimension_numbers = #tpu.dot_dimension_numbers<[1], [0], [0], [1], [0, 0, 1, 1], [], []>} : vector<8x32xf32>, vector<32x32xf32>, vector<8x32xf32> -> vector<8x32xf32>
    %35 = vector.shape_cast %15 : vector<8x32xf32> to vector<8x1x32xf32>
    %36 = vector.shape_cast %27 : vector<8x32xf32> to vector<1x8x32xf32>
    %37 = vector.broadcast %35 : vector<8x1x32xf32> to vector<8x8x32xf32>
    %38 = vector.broadcast %36 : vector<1x8x32xf32> to vector<8x8x32xf32>
    %39 = arith.mulf %37, %38 : vector<8x8x32xf32>
    %40 = vector.shape_cast %39 : vector<8x8x32xf32> to vector<64x32xf32>
    %c0_34 = arith.constant 0 : index
    %c0_35 = arith.constant 0 : index
    %41 = vector.load %arg14[%c0_34, %c0_35] : memref<32x32xf32, #tpu.memory_space<vmem>>, vector<32x32xf32>
    %cst_36 = arith.constant dense<0.000000e+00> : vector<64x32xf32>
    %42 = tpu.matmul %40, %41, %cst_36 {dimension_numbers = #tpu.dot_dimension_numbers<[1], [0], [0], [1], [0, 0, 1, 1], [], []>} : vector<64x32xf32>, vector<32x32xf32>, vector<64x32xf32> -> vector<64x32xf32>
    %43 = vector.shape_cast %42 : vector<64x32xf32> to vector<8x8x32xf32>
    %44 = vector.shape_cast %32 : vector<8x32xf32> to vector<8x1x32xf32>
    %45 = vector.broadcast %44 : vector<8x1x32xf32> to vector<8x8x32xf32>
    %46 = arith.addf %43, %45 : vector<8x8x32xf32>
    %47 = vector.shape_cast %34 : vector<8x32xf32> to vector<1x8x32xf32>
    %48 = vector.broadcast %47 : vector<1x8x32xf32> to vector<8x8x32xf32>
    %49 = arith.addf %46, %48 : vector<8x8x32xf32>
    %cst_37 = arith.constant 0.000000e+00 : f32
    %50 = vector.broadcast %cst_37 : f32 to vector<8x8x32xf32>
    %51 = arith.maximumf %49, %50 : vector<8x8x32xf32>
    %52 = vector.shape_cast %51 : vector<8x8x32xf32> to vector<64x32xf32>
    %c0_38 = arith.constant 0 : index
    %c0_39 = arith.constant 0 : index
    %53 = vector.load %arg16[%c0_38, %c0_39] : memref<32x16xf32, #tpu.memory_space<vmem>>, vector<32x16xf32>
    %cst_40 = arith.constant dense<0.000000e+00> : vector<64x16xf32>
    %54 = tpu.matmul %52, %53, %cst_40 {dimension_numbers = #tpu.dot_dimension_numbers<[1], [0], [0], [1], [0, 0, 1, 1], [], []>} : vector<64x32xf32>, vector<32x16xf32>, vector<64x16xf32> -> vector<64x16xf32>
    %c0_41 = arith.constant 0 : index
    %c0_42 = arith.constant 0 : index
    %55 = vector.load %arg17[%c0_41, %c0_42] : memref<1x16xf32, #tpu.memory_space<vmem>>, vector<1x16xf32>
    %56 = vector.broadcast %55 : vector<1x16xf32> to vector<64x16xf32>
    %57 = arith.addf %54, %56 : vector<64x16xf32>
    %58 = vector.shape_cast %57 : vector<64x16xf32> to vector<8x8x16xf32>
    %c0_43 = arith.constant 0 : index
    %c0_44 = arith.constant 0 : index
    %c0_45 = arith.constant 0 : index
    %c0_46 = arith.constant 0 : index
    %59 = vector.load %arg18[%c0_43, %c0_44, %c0_45, %c0_46] : memref<1x8x8x16xf32, #tpu.memory_space<vmem>>, vector<1x8x8x16xf32>
    %60 = vector.shape_cast %59 : vector<1x8x8x16xf32> to vector<8x8x16xf32>
    %61 = vector.shape_cast %58 : vector<8x8x16xf32> to vector<1x8x8x16xf32>
    tpu.vector_store %arg18[%c0_43, %c0_44, %c0_45, %c0_46], %61 {strides = array<i32>} : memref<1x8x8x16xf32, #tpu.memory_space<vmem>>, vector<1x8x8x16xf32>,
    return
  }
  func.func @transform_0(%arg0: i32, %arg1: i32, %arg2: i32) -> (i32, i32, i32) {
    %c0_i32 = arith.constant 0 : i32
    %c0_i32_0 = arith.constant 0 : i32
    return %arg0, %arg1, %c0_i32 : i32, i32, i32
  }
  func.func @transform_1(%arg0: i32, %arg1: i32, %arg2: i32) -> (i32, i32, i32) {
    %c0_i32 = arith.constant 0 : i32
    %c0_i32_0 = arith.constant 0 : i32
    return %arg0, %arg2, %c0_i32 : i32, i32, i32
  }
  func.func @transform_2(%arg0: i32, %arg1: i32, %arg2: i32) -> (i32, i32) {
    %c0_i32 = arith.constant 0 : i32
    %c0_i32_0 = arith.constant 0 : i32
    %c0_i32_1 = arith.constant 0 : i32
    return %c0_i32, %c0_i32_0 : i32, i32
  }
  func.func @transform_3(%arg0: i32, %arg1: i32, %arg2: i32) -> (i32, i32) {
    %c0_i32 = arith.constant 0 : i32
    %c0_i32_0 = arith.constant 0 : i32
    %c0_i32_1 = arith.constant 0 : i32
    return %c0_i32, %c0_i32_0 : i32, i32
  }
  func.func @transform_4(%arg0: i32, %arg1: i32, %arg2: i32) -> (i32, i32) {
    %c0_i32 = arith.constant 0 : i32
    %c0_i32_0 = arith.constant 0 : i32
    %c0_i32_1 = arith.constant 0 : i32
    return %c0_i32, %c0_i32_0 : i32, i32
  }
  func.func @transform_5(%arg0: i32, %arg1: i32, %arg2: i32) -> (i32, i32) {
    %c0_i32 = arith.constant 0 : i32
    %c0_i32_0 = arith.constant 0 : i32
    %c0_i32_1 = arith.constant 0 : i32
    return %c0_i32, %c0_i32_0 : i32, i32
  }
  func.func @transform_6(%arg0: i32, %arg1: i32, %arg2: i32) -> (i32, i32) {
    %c0_i32 = arith.constant 0 : i32
    %c0_i32_0 = arith.constant 0 : i32
    %c0_i32_1 = arith.constant 0 : i32
    return %c0_i32, %c0_i32_0 : i32, i32
  }
  func.func @transform_7(%arg0: i32, %arg1: i32, %arg2: i32) -> (i32, i32) {
    %c0_i32 = arith.constant 0 : i32
    %c0_i32_0 = arith.constant 0 : i32
    %c0_i32_1 = arith.constant 0 : i32
    return %c0_i32, %c0_i32_0 : i32, i32
  }
  func.func @transform_8(%arg0: i32, %arg1: i32, %arg2: i32) -> (i32, i32) {
    %c0_i32 = arith.constant 0 : i32
    %c0_i32_0 = arith.constant 0 : i32
    %c0_i32_1 = arith.constant 0 : i32
    return %c0_i32, %c0_i32_0 : i32, i32
  }
  func.func @transform_9(%arg0: i32, %arg1: i32, %arg2: i32) -> (i32, i32) {
    %c0_i32 = arith.constant 0 : i32
    %c0_i32_0 = arith.constant 0 : i32
    %c0_i32_1 = arith.constant 0 : i32
    return %c0_i32, %c0_i32_0 : i32, i32
  }
  func.func @transform_10(%arg0: i32, %arg1: i32, %arg2: i32) -> (i32, i32) {
    %c0_i32 = arith.constant 0 : i32
    %c0_i32_0 = arith.constant 0 : i32
    %c0_i32_1 = arith.constant 0 : i32
    return %c0_i32, %c0_i32_0 : i32, i32
  }
  func.func @transform_11(%arg0: i32, %arg1: i32, %arg2: i32) -> (i32, i32) {
    %c0_i32 = arith.constant 0 : i32
    %c0_i32_0 = arith.constant 0 : i32
    %c0_i32_1 = arith.constant 0 : i32
    return %c0_i32, %c0_i32_0 : i32, i32
  }
  func.func @transform_12(%arg0: i32, %arg1: i32, %arg2: i32) -> (i32, i32) {
    %c0_i32 = arith.constant 0 : i32
    %c0_i32_0 = arith.constant 0 : i32
    %c0_i32_1 = arith.constant 0 : i32
    return %c0_i32, %c0_i32_0 : i32, i32
  }
  func.func @transform_13(%arg0: i32, %arg1: i32, %arg2: i32) -> (i32, i32) {
    %c0_i32 = arith.constant 0 : i32
    %c0_i32_0 = arith.constant 0 : i32
    %c0_i32_1 = arith.constant 0 : i32
    return %c0_i32, %c0_i32_0 : i32, i32
  }
  func.func @transform_14(%arg0: i32, %arg1: i32, %arg2: i32) -> (i32, i32) {
    %c0_i32 = arith.constant 0 : i32
    %c0_i32_0 = arith.constant 0 : i32
    %c0_i32_1 = arith.constant 0 : i32
    return %c0_i32, %c0_i32_0 : i32, i32
  }
  func.func @transform_15(%arg0: i32, %arg1: i32, %arg2: i32) -> (i32, i32, i32, i32) {
    %c0_i32 = arith.constant 0 : i32
    %c0_i32_0 = arith.constant 0 : i32
    return %arg0, %arg1, %arg2, %c0_i32 : i32, i32, i32, i32
  }
}

</mosaic_0001>

<llo_original>
// kernel: tpu_custom_call.1
$region0: #{tpu_custom_call.1}
  #allocation0 [shape = 'u32[]', space=smem, size = 0x4, offset = 0x4, fixed_abs, tag = 'smem constant byte address 0x4 - core index']
  #allocation1 [shape = 'u32[72,128]{1,0:T(1,128)}', space=vmem, size = 0x9000, scoped, tag = 'internal scratch']
  %s0 = inlined_call_operand.vmem [shape: f32[2,8,32], index: 0, kind: input, shape index: {}]
  %s1 = inlined_call_operand.hbm [shape: f32[2,8,32], index: 1, kind: input, shape index: {}]
  %s2 = inlined_call_operand.vmem [shape: f32[32,32], index: 2, kind: input, shape index: {}]
  %s3 = inlined_call_operand.vmem [shape: f32[1,32], index: 3, kind: input, shape index: {}]
  %s4 = inlined_call_operand.hbm [shape: f32[32,32], index: 4, kind: input, shape index: {}]
  %s5 = inlined_call_operand.vmem [shape: f32[1,32], index: 5, kind: input, shape index: {}]
  %s6 = inlined_call_operand.hbm [shape: f32[32,32], index: 6, kind: input, shape index: {}]
  %s7 = inlined_call_operand.vmem [shape: f32[1,32], index: 7, kind: input, shape index: {}]
  %s8 = inlined_call_operand.hbm [shape: f32[32,32], index: 8, kind: input, shape index: {}]
  %s9 = inlined_call_operand.vmem [shape: f32[1,32], index: 9, kind: input, shape index: {}]
  %s10 = inlined_call_operand.hbm [shape: f32[32,32], index: 10, kind: input, shape index: {}]
  %s11 = inlined_call_operand.hbm [shape: f32[32,32], index: 11, kind: input, shape index: {}]
  %s12 = inlined_call_operand.vmem [shape: f32[1,32], index: 12, kind: input, shape index: {}]
  %s13 = inlined_call_operand.vmem [shape: f32[32,16], index: 13, kind: input, shape index: {}]
  %s14 = inlined_call_operand.vmem [shape: f32[1,16], index: 14, kind: input, shape index: {}]
  %s15 = inlined_call_operand.hbm [shape: f32[2,8,8,16], index: 15, kind: output, shape index: {}]
  %s16 = sld [smem:[#allocation0]]
  $region117: #{tpu_custom_call.1} parent=0
    _
  %s18 = ssub.s32 1, %s16
  %s19 = scalar_select 0, %s18, %s16
  $region1: #{tpu_custom_call.1} parent=0
    #allocation2 [shape = 'u8[8192]{0}', space=vmem, size = 0x2000, scoped, tag = 'input window, operand 1']
    #allocation3 [shape = 's32[2]{0}', space=sflag, size = 0x8, scoped, tag = 'scoped memory for tpu_custom_call.1']
    #allocation4 [shape = 's32[2]{0}', space=sflag, size = 0x8, scoped, tag = 'scoped memory for tpu_custom_call.1']
    #allocation5 [shape = 'u8[16384]{0}', space=vmem, size = 0x4000, scoped, tag = 'input window, operand 4, single buffered']
    #allocation6 [shape = 's32[1]{0}', space=sflag, size = 0x4, scoped, tag = 'scoped memory for tpu_custom_call.1']
    #allocation7 [shape = 'u8[16384]{0}', space=vmem, size = 0x4000, scoped, tag = 'input window, operand 6, single buffered']
    #allocation8 [shape = 'u8[16384]{0}', space=vmem, size = 0x4000, scoped, tag = 'input window, operand 8, single buffered']
    #allocation9 [shape = 's32[1]{0}', space=sflag, size = 0x4, scoped, tag = 'scoped memory for tpu_custom_call.1']
    #allocation10 [shape = 'u8[16384]{0}', space=vmem, size = 0x4000, scoped, tag = 'input window, operand 10, single buffered']
    #allocation11 [shape = 'u8[16384]{0}', space=vmem, size = 0x4000, scoped, tag = 'input window, operand 11, single buffered']
    #allocation12 [shape = 's32[1]{0}', space=sflag, size = 0x4, scoped, tag = 'scoped memory for tpu_custom_call.1']
    #allocation13 [shape = 'u8[65536]{0}', space=vmem, size = 0x10000, scoped, tag = 'output window, operand 0']
    %20 = vsyncpa [#allocation3], 0
    %s21 = scalar_lea.sflag [#allocation3], 1
    %22 = vsyncpa %s21, 0
    %23 = vsyncpa [#allocation6], 0
    %24 = vsyncpa [#allocation9], 0
    %25 = vsyncpa [#allocation12], 0
    %26 = vsyncpa [#allocation4], 0
    %s27 = scalar_lea.sflag [#allocation4], 1
    %28 = vsyncpa %s27, 0
    loop: start=0, step=1, limit=4
    $region2: #{tpu_custom_call.1} parent=1 // loop_pre_header
      _
    $region3: #{tpu_custom_call.1} parent=1 // loop_header
      %s30 = sphi 0, %s34
      %p31 = scmp.ge.s32.totalorder %s30, 4
      %s37 = sphi 0, %s56
      %s38 = sphi 0, %s52
      %s39 = sphi 0, %s48
      %s40 = sphi 0, %s37
      %s41 = sphi 0, %s38
      %s42 = sphi 0, %s39
      %s43 = sphi 0, %s40
      %s44 = sphi 0, %s41
      %s45 = sphi 0, %s42
      %s61 = sphi 0, %s63
      %s64 = sphi 0, %s61
      %s65 = sphi 0, %s64
      %s81 = sphi 0, %s65
      %s89 = sphi 0, %s91
      %s92 = sphi 0, %s89
      %s93 = sphi 0, %s92
      %s109 = sphi 0, %s93
      %s113 = sphi 0, %s113
      %s115 = sphi 0, %s113
      %s116 = sphi 0, %s115
      %s130 = sphi 0, %s116
      %s134 = sphi 0, %s134
      %s136 = sphi 0, %s134
      %s137 = sphi 0, %s136
      %s151 = sphi 0, %s137
      %s155 = sphi 0, %s155
      %s157 = sphi 0, %s155
      %s158 = sphi 0, %s157
      %s172 = sphi 0, %s158
      %s176 = sphi 0, %s176
      %s178 = sphi 0, %s176
      %s179 = sphi 0, %s178
      %s193 = sphi 0, %s179
      %s197 = sphi 0, %s197
      %s199 = sphi 0, %s197
      %s200 = sphi 0, %s199
      %s214 = sphi 0, %s200
      %s218 = sphi 0, %s218
      %s220 = sphi 0, %s218
      %s221 = sphi 0, %s220
      %s235 = sphi 0, %s221
      %s239 = sphi 0, %s239
      %s241 = sphi 0, %s239
      %s242 = sphi 0, %s241
      %s256 = sphi 0, %s242
      %s260 = sphi 0, %s260
      %s262 = sphi 0, %s260
      %s263 = sphi 0, %s262
      %s277 = sphi 0, %s263
      %s281 = sphi 0, %s281
      %s283 = sphi 0, %s281
      %s284 = sphi 0, %s283
      %s298 = sphi 0, %s284
      %s302 = sphi 0, %s302
      %s304 = sphi 0, %s302
      %s305 = sphi 0, %s304
      %s319 = sphi 0, %s305
      %s323 = sphi 0, %s323
      %s325 = sphi 0, %s323
      %s326 = sphi 0, %s325
      %s340 = sphi 0, %s326
      %s344 = sphi 0, %s344
      %s346 = sphi 0, %s344
      %s347 = sphi 0, %s346
      %s361 = sphi 0, %s347
      %s365 = sphi 0, %s365
      %s367 = sphi 0, %s365
      %s368 = sphi 0, %s367
      %s382 = sphi 0, %s368
      %s392 = sphi 0, %s394
      %s395 = sphi 0, %s392
      %s396 = sphi 0, %s395
      %s412 = sphi 0, %s396
    $region4: #{tpu_custom_call.1} parent=1 // loop_header_branch
      %33 = sbr.rel (%p31) target = $region8
    $region5: #{tpu_custom_call.1} parent=1 // loop_body
      %s35 = ssub.s32 %s30, 1
      %s36 = ssub.s32 %s30, 2
      %s46 = sadd.s32 1, %s39
      %p47 = scmp.ge.s32.totalorder %s46, 1
      %s48 = scalar_select %p47, 0, %s46
      %s49 = sadd.s32 1, %s38
      %s50 = scalar_select %p47, %s49, %s38
      %p51 = scmp.ge.s32.totalorder %s50, 1
      %s52 = scalar_select %p51, 0, %s50
      %s53 = sadd.s32 1, %s37
      %s54 = scalar_select %p51, %s53, %s37
      %p55 = scmp.ge.s32.totalorder %s54, 2
      %s56 = scalar_select %p55, 0, %s54
      %s57 = ssub.s32 %s37, %s56
      %s58 = ssub.s32 %s38, %s52
      %s59 = sor.u32 %s57, %s58
      %p60 = scmp.eq.s32.totalorder %s59, 0
      %s62 = sadd.s32 %s61, 1
      %s63 = scalar_select %p60, %s61, %s62
      %p66 = pneg %p60
      %p67 = scmp.eq.s32.totalorder %s30, 1
      %p68 = por %p66, %p67
      %p69 = scmp.ne.s32.totalorder %s61, %s64
      %p70 = scmp.eq.s32.totalorder %s30, 0
      %p71 = por %p69, %p70
      %p72 = scmp.ne.s32.totalorder %s61, %s64
      %p73 = scmp.eq.s32.totalorder %s35, 1
      %p74 = por %p72, %p73
      %p75 = scmp.ne.s32.totalorder %s64, %s65
      %p76 = scmp.eq.s32.totalorder %s35, 0
      %p77 = por %p75, %p76
      %p78 = scmp.ne.s32.totalorder %s64, %s65
      %p79 = scmp.eq.s32.totalorder %s36, 1
      %p80 = por %p78, %p79
      %p82 = scmp.ne.s32.totalorder %s65, %s81
      %p83 = scmp.eq.s32.totalorder %s36, 0
      %p84 = por %p82, %p83
      %s85 = ssub.s32 %s37, %s56
      %s86 = ssub.s32 %s39, %s48
      %s87 = sor.u32 %s85, %s86
      %p88 = scmp.eq.s32.totalorder %s87, 0
      %s90 = sadd.s32 %s89, 1
      %s91 = scalar_select %p88, %s89, %s90
      %p94 = pneg %p88
      %p95 = scmp.eq.s32.totalorder %s30, 1
      %p96 = por %p94, %p95
      %p97 = scmp.ne.s32.totalorder %s89, %s92
      %p98 = scmp.eq.s32.totalorder %s30, 0
      %p99 = por %p97, %p98
      %p100 = scmp.ne.s32.totalorder %s89, %s92
      %p101 = scmp.eq.s32.totalorder %s35, 1
      %p102 = por %p100, %p101
      %p103 = scmp.ne.s32.totalorder %s92, %s93
      %p104 = scmp.eq.s32.totalorder %s35, 0
      %p105 = por %p103, %p104
      %p106 = scmp.ne.s32.totalorder %s92, %s93
      %p107 = scmp.eq.s32.totalorder %s36, 1
      %p108 = por %p106, %p107
      %p110 = scmp.ne.s32.totalorder %s93, %s109
      %p111 = scmp.eq.s32.totalorder %s36, 0
      %p112 = por %p110, %p111
      %s114 = sadd.s32 %s113, 1
      %p117 = scmp.eq.s32.totalorder %s30, 1
      %p118 = scmp.ne.s32.totalorder %s113, %s115
      %p119 = scmp.eq.s32.totalorder %s30, 0
      %p120 = por %p118, %p119
      %p121 = scmp.ne.s32.totalorder %s113, %s115
      %p122 = scmp.eq.s32.totalorder %s35, 1
      %p123 = por %p121, %p122
      %p124 = scmp.ne.s32.totalorder %s115, %s116
      %p125 = scmp.eq.s32.totalorder %s35, 0
      %p126 = por %p124, %p125
      %p127 = scmp.ne.s32.totalorder %s115, %s116
      %p128 = scmp.eq.s32.totalorder %s36, 1
      %p129 = por %p127, %p128
      %p131 = scmp.ne.s32.totalorder %s116, %s130
      %p132 = scmp.eq.s32.totalorder %s36, 0
      %p133 = por %p131, %p132
      %s135 = sadd.s32 %s134, 1
      %p138 = scmp.eq.s32.totalorder %s30, 1
      %p139 = scmp.ne.s32.totalorder %s134, %s136
      %p140 = scmp.eq.s32.totalorder %s30, 0
      %p141 = por %p139, %p140
      %p142 = scmp.ne.s32.totalorder %s134, %s136
      %p143 = scmp.eq.s32.totalorder %s35, 1
      %p144 = por %p142, %p143
      %p145 = scmp.ne.s32.totalorder %s136, %s137
      %p146 = scmp.eq.s32.totalorder %s35, 0
      %p147 = por %p145, %p146
      %p148 = scmp.ne.s32.totalorder %s136, %s137
      %p149 = scmp.eq.s32.totalorder %s36, 1
      %p150 = por %p148, %p149
      %p152 = scmp.ne.s32.totalorder %s137, %s151
      %p153 = scmp.eq.s32.totalorder %s36, 0
      %p154 = por %p152, %p153
      %s156 = sadd.s32 %s155, 1
      %p159 = scmp.eq.s32.totalorder %s30, 1
      %p160 = scmp.ne.s32.totalorder %s155, %s157
      %p161 = scmp.eq.s32.totalorder %s30, 0
      %p162 = por %p160, %p161
      %p163 = scmp.ne.s32.totalorder %s155, %s157
      %p164 = scmp.eq.s32.totalorder %s35, 1
      %p165 = por %p163, %p164
      %p166 = scmp.ne.s32.totalorder %s157, %s158
      %p167 = scmp.eq.s32.totalorder %s35, 0
      %p168 = por %p166, %p167
      %p169 = scmp.ne.s32.totalorder %s157, %s158
      %p170 = scmp.eq.s32.totalorder %s36, 1
      %p171 = por %p169, %p170
      %p173 = scmp.ne.s32.totalorder %s158, %s172
      %p174 = scmp.eq.s32.totalorder %s36, 0
      %p175 = por %p173, %p174
      %s177 = sadd.s32 %s176, 1
      %p180 = scmp.eq.s32.totalorder %s30, 1
      %p181 = scmp.ne.s32.totalorder %s176, %s178
      %p182 = scmp.eq.s32.totalorder %s30, 0
      %p183 = por %p181, %p182
      %p184 = scmp.ne.s32.totalorder %s176, %s178
      %p185 = scmp.eq.s32.totalorder %s35, 1
      %p186 = por %p184, %p185
      %p187 = scmp.ne.s32.totalorder %s178, %s179
      %p188 = scmp.eq.s32.totalorder %s35, 0
      %p189 = por %p187, %p188
      %p190 = scmp.ne.s32.totalorder %s178, %s179
      %p191 = scmp.eq.s32.totalorder %s36, 1
      %p192 = por %p190, %p191
      %p194 = scmp.ne.s32.totalorder %s179, %s193
      %p195 = scmp.eq.s32.totalorder %s36, 0
      %p196 = por %p194, %p195
      %s198 = sadd.s32 %s197, 1
      %p201 = scmp.eq.s32.totalorder %s30, 1
      %p202 = scmp.ne.s32.totalorder %s197, %s199
      %p203 = scmp.eq.s32.totalorder %s30, 0
      %p204 = por %p202, %p203
      %p205 = scmp.ne.s32.totalorder %s197, %s199
      %p206 = scmp.eq.s32.totalorder %s35, 1
      %p207 = por %p205, %p206
      %p208 = scmp.ne.s32.totalorder %s199, %s200
      %p209 = scmp.eq.s32.totalorder %s35, 0
      %p210 = por %p208, %p209
      %p211 = scmp.ne.s32.totalorder %s199, %s200
      %p212 = scmp.eq.s32.totalorder %s36, 1
      %p213 = por %p211, %p212
      %p215 = scmp.ne.s32.totalorder %s200, %s214
      %p216 = scmp.eq.s32.totalorder %s36, 0
      %p217 = por %p215, %p216
      %s219 = sadd.s32 %s218, 1
      %p222 = scmp.eq.s32.totalorder %s30, 1
      %p223 = scmp.ne.s32.totalorder %s218, %s220
      %p224 = scmp.eq.s32.totalorder %s30, 0
      %p225 = por %p223, %p224
      %p226 = scmp.ne.s32.totalorder %s218, %s220
      %p227 = scmp.eq.s32.totalorder %s35, 1
      %p228 = por %p226, %p227
      %p229 = scmp.ne.s32.totalorder %s220, %s221
      %p230 = scmp.eq.s32.totalorder %s35, 0
      %p231 = por %p229, %p230
      %p232 = scmp.ne.s32.totalorder %s220, %s221
      %p233 = scmp.eq.s32.totalorder %s36, 1
      %p234 = por %p232, %p233
      %p236 = scmp.ne.s32.totalorder %s221, %s235
      %p237 = scmp.eq.s32.totalorder %s36, 0
      %p238 = por %p236, %p237
      %s240 = sadd.s32 %s239, 1
      %p243 = scmp.eq.s32.totalorder %s30, 1
      %p244 = scmp.ne.s32.totalorder %s239, %s241
      %p245 = scmp.eq.s32.totalorder %s30, 0
      %p246 = por %p244, %p245
      %p247 = scmp.ne.s32.totalorder %s239, %s241
      %p248 = scmp.eq.s32.totalorder %s35, 1
      %p249 = por %p247, %p248
      %p250 = scmp.ne.s32.totalorder %s241, %s242
      %p251 = scmp.eq.s32.totalorder %s35, 0
      %p252 = por %p250, %p251
      %p253 = scmp.ne.s32.totalorder %s241, %s242
      %p254 = scmp.eq.s32.totalorder %s36, 1
      %p255 = por %p253, %p254
      %p257 = scmp.ne.s32.totalorder %s242, %s256
      %p258 = scmp.eq.s32.totalorder %s36, 0
      %p259 = por %p257, %p258
      %s261 = sadd.s32 %s260, 1
      %p264 = scmp.eq.s32.totalorder %s30, 1
      %p265 = scmp.ne.s32.totalorder %s260, %s262
      %p266 = scmp.eq.s32.totalorder %s30, 0
      %p267 = por %p265, %p266
      %p268 = scmp.ne.s32.totalorder %s260, %s262
      %p269 = scmp.eq.s32.totalorder %s35, 1
      %p270 = por %p268, %p269
      %p271 = scmp.ne.s32.totalorder %s262, %s263
      %p272 = scmp.eq.s32.totalorder %s35, 0
      %p273 = por %p271, %p272
      %p274 = scmp.ne.s32.totalorder %s262, %s263
      %p275 = scmp.eq.s32.totalorder %s36, 1
      %p276 = por %p274, %p275
      %p278 = scmp.ne.s32.totalorder %s263, %s277
      %p279 = scmp.eq.s32.totalorder %s36, 0
      %p280 = por %p278, %p279
      %s282 = sadd.s32 %s281, 1
      %p285 = scmp.eq.s32.totalorder %s30, 1
      %p286 = scmp.ne.s32.totalorder %s281, %s283
      %p287 = scmp.eq.s32.totalorder %s30, 0
      %p288 = por %p286, %p287
      %p289 = scmp.ne.s32.totalorder %s281, %s283
      %p290 = scmp.eq.s32.totalorder %s35, 1
      %p291 = por %p289, %p290
      %p292 = scmp.ne.s32.totalorder %s283, %s284
      %p293 = scmp.eq.s32.totalorder %s35, 0
      %p294 = por %p292, %p293
      %p295 = scmp.ne.s32.totalorder %s283, %s284
      %p296 = scmp.eq.s32.totalorder %s36, 1
      %p297 = por %p295, %p296
      %p299 = scmp.ne.s32.totalorder %s284, %s298
      %p300 = scmp.eq.s32.totalorder %s36, 0
      %p301 = por %p299, %p300
      %s303 = sadd.s32 %s302, 1
      %p306 = scmp.eq.s32.totalorder %s30, 1
      %p307 = scmp.ne.s32.totalorder %s302, %s304
      %p308 = scmp.eq.s32.totalorder %s30, 0
      %p309 = por %p307, %p308
      %p310 = scmp.ne.s32.totalorder %s302, %s304
      %p311 = scmp.eq.s32.totalorder %s35, 1
      %p312 = por %p310, %p311
      %p313 = scmp.ne.s32.totalorder %s304, %s305
      %p314 = scmp.eq.s32.totalorder %s35, 0
      %p315 = por %p313, %p314
      %p316 = scmp.ne.s32.totalorder %s304, %s305
      %p317 = scmp.eq.s32.totalorder %s36, 1
      %p318 = por %p316, %p317
      %p320 = scmp.ne.s32.totalorder %s305, %s319
      %p321 = scmp.eq.s32.totalorder %s36, 0
      %p322 = por %p320, %p321
      %s324 = sadd.s32 %s323, 1
      %p327 = scmp.eq.s32.totalorder %s30, 1
      %p328 = scmp.ne.s32.totalorder %s323, %s325
      %p329 = scmp.eq.s32.totalorder %s30, 0
      %p330 = por %p328, %p329
      %p331 = scmp.ne.s32.totalorder %s323, %s325
      %p332 = scmp.eq.s32.totalorder %s35, 1
      %p333 = por %p331, %p332
      %p334 = scmp.ne.s32.totalorder %s325, %s326
      %p335 = scmp.eq.s32.totalorder %s35, 0
      %p336 = por %p334, %p335
      %p337 = scmp.ne.s32.totalorder %s325, %s326
      %p338 = scmp.eq.s32.totalorder %s36, 1
      %p339 = por %p337, %p338
      %p341 = scmp.ne.s32.totalorder %s326, %s340
      %p342 = scmp.eq.s32.totalorder %s36, 0
      %p343 = por %p341, %p342
      %s345 = sadd.s32 %s344, 1
      %p348 = scmp.eq.s32.totalorder %s30, 1
      %p349 = scmp.ne.s32.totalorder %s344, %s346
      %p350 = scmp.eq.s32.totalorder %s30, 0
      %p351 = por %p349, %p350
      %p352 = scmp.ne.s32.totalorder %s344, %s346
      %p353 = scmp.eq.s32.totalorder %s35, 1
      %p354 = por %p352, %p353
      %p355 = scmp.ne.s32.totalorder %s346, %s347
      %p356 = scmp.eq.s32.totalorder %s35, 0
      %p357 = por %p355, %p356
      %p358 = scmp.ne.s32.totalorder %s346, %s347
      %p359 = scmp.eq.s32.totalorder %s36, 1
      %p360 = por %p358, %p359
      %p362 = scmp.ne.s32.totalorder %s347, %s361
      %p363 = scmp.eq.s32.totalorder %s36, 0
      %p364 = por %p362, %p363
      %s366 = sadd.s32 %s365, 1
      %p369 = scmp.eq.s32.totalorder %s30, 1
      %p370 = scmp.ne.s32.totalorder %s365, %s367
      %p371 = scmp.eq.s32.totalorder %s30, 0
      %p372 = por %p370, %p371
      %p373 = scmp.ne.s32.totalorder %s365, %s367
      %p374 = scmp.eq.s32.totalorder %s35, 1
      %p375 = por %p373, %p374
      %p376 = scmp.ne.s32.totalorder %s367, %s368
      %p377 = scmp.eq.s32.totalorder %s35, 0
      %p378 = por %p376, %p377
      %p379 = scmp.ne.s32.totalorder %s367, %s368
      %p380 = scmp.eq.s32.totalorder %s36, 1
      %p381 = por %p379, %p380
      %p383 = scmp.ne.s32.totalorder %s368, %s382
      %p384 = scmp.eq.s32.totalorder %s36, 0
      %p385 = por %p383, %p384
      %s386 = ssub.s32 %s37, %s56
      %s387 = ssub.s32 %s38, %s52
      %s388 = sor.u32 %s386, %s387
      %s389 = ssub.s32 %s39, %s48
      %s390 = sor.u32 %s388, %s389
      %p391 = scmp.eq.s32.totalorder %s390, 0
      %s393 = sadd.s32 %s392, 1
      %s394 = scalar_select %p391, %s392, %s393
      %p397 = pneg %p391
      %p398 = scmp.eq.s32.totalorder %s30, 1
      %p399 = por %p397, %p398
      %p400 = scmp.ne.s32.totalorder %s392, %s395
      %p401 = scmp.eq.s32.totalorder %s30, 0
      %p402 = por %p400, %p401
      %p403 = scmp.ne.s32.totalorder %s392, %s395
      %p404 = scmp.eq.s32.totalorder %s35, 1
      %p405 = por %p403, %p404
      %p406 = scmp.ne.s32.totalorder %s395, %s396
      %p407 = scmp.eq.s32.totalorder %s35, 0
      %p408 = por %p406, %p407
      %p409 = scmp.ne.s32.totalorder %s395, %s396
      %p410 = scmp.eq.s32.totalorder %s36, 1
      %p411 = por %p409, %p410
      %p413 = scmp.ne.s32.totalorder %s396, %s412
      %p414 = scmp.eq.s32.totalorder %s36, 0
      %p415 = por %p413, %p414
      %p416 = scmp.le.s32.totalorder 1, %s30
      %p417 = scmp.lt.s32.totalorder %s30, 3
      %p418 = pnand %p416, %p417
      %p419 = pneg %p418
      // Predicated region
      $region9: #{tpu_custom_call.1} parent=5 // pred_check
        _
      $region10: #{tpu_custom_call.1} parent=5 // pred_check_branch
        %421 = sbr.rel (%p418) target = $region12
      $region11: #{tpu_custom_call.1} parent=5 // pred_region
        %s422 = ssub.s32 %s30, 1
        // Predicated region
        $region13: #{tpu_custom_call.1} parent=11 // pred_check
          %p423 = pneg %p126
        $region14: #{tpu_custom_call.1} parent=11 // pred_check_branch
          %425 = sbr.rel (%p423) target = $region16
        $region15: #{tpu_custom_call.1} parent=11 // pred_region
          _
        $region16: #{tpu_custom_call.1} parent=11 // pred_fallthru
          _
        // Predicated region
        $region17: #{tpu_custom_call.1} parent=11 // pred_check
          %p426 = pneg %p147
        $region18: #{tpu_custom_call.1} parent=11 // pred_check_branch
          %428 = sbr.rel (%p426) target = $region20
        $region19: #{tpu_custom_call.1} parent=11 // pred_region
          _
        $region20: #{tpu_custom_call.1} parent=11 // pred_fallthru
          _
        // Predicated region
        $region21: #{tpu_custom_call.1} parent=11 // pred_check
          %p429 = pneg %p168
        $region22: #{tpu_custom_call.1} parent=11 // pred_check_branch
          %431 = sbr.rel (%p429) target = $region24
        $region23: #{tpu_custom_call.1} parent=11 // pred_region
          %433 = vsyncadd [#allocation6], 0
          %s434 = sshll.u32 %s4, 4
          %s435 = int_to_ptr.hbm [resolvable:$true] %s434
          %s436 = sshll.u32 [#allocation5], 4
          %s437 = int_to_ptr.vmem [resolvable:$true] %s436
          %442 = dma.hbm_to_vmem [thread:$0]  %s435, 512, %s437, [#allocation6], 128, 128, 8
        $region24: #{tpu_custom_call.1} parent=11 // pred_fallthru
          _
        // Predicated region
        $region25: #{tpu_custom_call.1} parent=11 // pred_check
          %p443 = pneg %p189
        $region26: #{tpu_custom_call.1} parent=11 // pred_check_branch
          %445 = sbr.rel (%p443) target = $region28
        $region27: #{tpu_custom_call.1} parent=11 // pred_region
          _
        $region28: #{tpu_custom_call.1} parent=11 // pred_fallthru
          _
        // Predicated region
        $region29: #{tpu_custom_call.1} parent=11 // pred_check
          %p446 = pneg %p210
        $region30: #{tpu_custom_call.1} parent=11 // pred_check_branch
          %448 = sbr.rel (%p446) target = $region32
        $region31: #{tpu_custom_call.1} parent=11 // pred_region
          %450 = vsyncadd [#allocation6], 0
          %s451 = sshll.u32 %s6, 4
          %s452 = int_to_ptr.hbm [resolvable:$true] %s451
          %s453 = sshll.u32 [#allocation7], 4
          %s454 = int_to_ptr.vmem [resolvable:$true] %s453
          %459 = dma.hbm_to_vmem [thread:$0]  %s452, 512, %s454, [#allocation6], 128, 128, 8
        $region32: #{tpu_custom_call.1} parent=11 // pred_fallthru
          _
        // Predicated region
        $region33: #{tpu_custom_call.1} parent=11 // pred_check
          %p460 = pneg %p231
        $region34: #{tpu_custom_call.1} parent=11 // pred_check_branch
          %462 = sbr.rel (%p460) target = $region36
        $region35: #{tpu_custom_call.1} parent=11 // pred_region
          _
        $region36: #{tpu_custom_call.1} parent=11 // pred_fallthru
          _
        // Predicated region
        $region37: #{tpu_custom_call.1} parent=11 // pred_check
          %p463 = pneg %p252
        $region38: #{tpu_custom_call.1} parent=11 // pred_check_branch
          %465 = sbr.rel (%p463) target = $region40
        $region39: #{tpu_custom_call.1} parent=11 // pred_region
          %467 = vsyncadd [#allocation9], 0
          %s468 = sshll.u32 %s8, 4
          %s469 = int_to_ptr.hbm [resolvable:$true] %s468
          %s470 = sshll.u32 [#allocation8], 4
          %s471 = int_to_ptr.vmem [resolvable:$true] %s470
          %476 = dma.hbm_to_vmem [thread:$0]  %s469, 512, %s471, [#allocation9], 128, 128, 8
        $region40: #{tpu_custom_call.1} parent=11 // pred_fallthru
          _
        // Predicated region
        $region41: #{tpu_custom_call.1} parent=11 // pred_check
          %p477 = pneg %p273
        $region42: #{tpu_custom_call.1} parent=11 // pred_check_branch
          %479 = sbr.rel (%p477) target = $region44
        $region43: #{tpu_custom_call.1} parent=11 // pred_region
          _
        $region44: #{tpu_custom_call.1} parent=11 // pred_fallthru
          _
        // Predicated region
        $region45: #{tpu_custom_call.1} parent=11 // pred_check
          %p480 = pneg %p294
        $region46: #{tpu_custom_call.1} parent=11 // pred_check_branch
          %482 = sbr.rel (%p480) target = $region48
        $region47: #{tpu_custom_call.1} parent=11 // pred_region
          %484 = vsyncadd [#allocation9], 0
          %s485 = sshll.u32 %s10, 4
          %s486 = int_to_ptr.hbm [resolvable:$true] %s485
          %s487 = sshll.u32 [#allocation10], 4
          %s488 = int_to_ptr.vmem [resolvable:$true] %s487
          %493 = dma.hbm_to_vmem [thread:$0]  %s486, 512, %s488, [#allocation9], 128, 128, 8
        $region48: #{tpu_custom_call.1} parent=11 // pred_fallthru
          _
        // Predicated region
        $region49: #{tpu_custom_call.1} parent=11 // pred_check
          %p494 = pneg %p315
        $region50: #{tpu_custom_call.1} parent=11 // pred_check_branch
          %496 = sbr.rel (%p494) target = $region52
        $region51: #{tpu_custom_call.1} parent=11 // pred_region
          %498 = vsyncadd [#allocation12], 0
          %s499 = sshll.u32 %s11, 4
          %s500 = int_to_ptr.hbm [resolvable:$true] %s499
          %s501 = sshll.u32 [#allocation11], 4
          %s502 = int_to_ptr.vmem [resolvable:$true] %s501
          %507 = dma.hbm_to_vmem [thread:$0]  %s500, 512, %s502, [#allocation12], 128, 128, 8
        $region52: #{tpu_custom_call.1} parent=11 // pred_fallthru
          _
        // Predicated region
        $region53: #{tpu_custom_call.1} parent=11 // pred_check
          %p508 = pneg %p336
        $region54: #{tpu_custom_call.1} parent=11 // pred_check_branch
          %510 = sbr.rel (%p508) target = $region56
        $region55: #{tpu_custom_call.1} parent=11 // pred_region
          _
        $region56: #{tpu_custom_call.1} parent=11 // pred_fallthru
          _
        // Predicated region
        $region57: #{tpu_custom_call.1} parent=11 // pred_check
          %p511 = pneg %p357
        $region58: #{tpu_custom_call.1} parent=11 // pred_check_branch
          %513 = sbr.rel (%p511) target = $region60
        $region59: #{tpu_custom_call.1} parent=11 // pred_region
          _
        $region60: #{tpu_custom_call.1} parent=11 // pred_fallthru
          _
        // Predicated region
        $region61: #{tpu_custom_call.1} parent=11 // pred_check
          %p514 = pneg %p378
        $region62: #{tpu_custom_call.1} parent=11 // pred_check_branch
          %516 = sbr.rel (%p514) target = $region64
        $region63: #{tpu_custom_call.1} parent=11 // pred_region
          _
        $region64: #{tpu_custom_call.1} parent=11 // pred_fallthru
          _
      $region12: #{tpu_custom_call.1} parent=5 // pred_fallthru
        _
      %p517 = scmp.lt.s32.totalorder %s30, 2
      // Predicated region
      $region65: #{tpu_custom_call.1} parent=5 // pred_check
        %p518 = pneg %p517
      $region66: #{tpu_custom_call.1} parent=5 // pred_check_branch
        %520 = sbr.rel (%p518) target = $region68
      $region67: #{tpu_custom_call.1} parent=5 // pred_region
        // Predicated region
        $region69: #{tpu_custom_call.1} parent=67 // pred_check
          %p521 = pneg %p71
        $region70: #{tpu_custom_call.1} parent=67 // pred_check_branch
          %523 = sbr.rel (%p521) target = $region72
        $region71: #{tpu_custom_call.1} parent=67 // pred_region
          %p524 = scmp.lt.s32.totalorder %s37, 1
          %s525 = scalar_select %p524, %s37, 1
          %p526 = scmp.lt.s32.totalorder %s38, 0
          %s527 = scalar_select %p526, %s38, 0
          %s528 = sadd.s32 %s527, %s525
          %s529 = smul.addr %s528, 8
          %s530 = scalar_lea.vmem %s0, %s529
        $region72: #{tpu_custom_call.1} parent=67 // pred_fallthru
          _
        // Predicated region
        $region73: #{tpu_custom_call.1} parent=67 // pred_check
          %p531 = pneg %p99
        $region74: #{tpu_custom_call.1} parent=67 // pred_check_branch
          %533 = sbr.rel (%p531) target = $region76
        $region75: #{tpu_custom_call.1} parent=67 // pred_region
          %s534 = sand.u32 %s89, 1
          %s535 = scalar_lea.sflag [#allocation3], %s534
          %s536 = sand.u32 %s89, 1
          %s537 = smul.addr %s536, 8
          %s538 = scalar_lea.vmem [#allocation2], %s537
          %540 = vsyncadd %s535, 0
          %s541 = sadd.s32 %s39, %s37
          %s542 = smul.addr %s541, 8
          %s543 = scalar_lea.hbm %s1, %s542
          %s545 = sshll.u32 %s543, 4
          %s546 = int_to_ptr.hbm [resolvable:$true] %s545
          %s547 = sshll.u32 %s538, 4
          %s548 = int_to_ptr.vmem [resolvable:$true] %s547
          %550 = dma.hbm_to_vmem [thread:$0]  %s546, 128, %s548, %s535
        $region76: #{tpu_custom_call.1} parent=67 // pred_fallthru
          _
      $region68: #{tpu_custom_call.1} parent=5 // pred_fallthru
        _
      %p551 = scmp.le.s32.totalorder 1, %s30
      %p552 = scmp.lt.s32.totalorder %s30, 3
      %p553 = pnand %p551, %p552
      %p554 = pneg %p553
      // Predicated region
      $region77: #{tpu_custom_call.1} parent=5 // pred_check
        _
      $region78: #{tpu_custom_call.1} parent=5 // pred_check_branch
        %556 = sbr.rel (%p553) target = $region80
      $region79: #{tpu_custom_call.1} parent=5 // pred_region
        %s557 = ssub.s32 %s30, 1
        %s558 = sand.u32 %s92, 1
        %s559 = scalar_lea.sflag [#allocation3], %s558
        %s560 = sand.u32 %s92, 1
        %s561 = smul.addr %s560, 8
        %s562 = scalar_lea.vmem [#allocation2], %s561
        // Predicated region
        $region81: #{tpu_custom_call.1} parent=79 // pred_check
          %p563 = pneg %p105
        $region82: #{tpu_custom_call.1} parent=79 // pred_check_branch
          %565 = sbr.rel (%p563) target = $region84
        $region83: #{tpu_custom_call.1} parent=79 // pred_region
          %567 = dma.done %s559, 128
        $region84: #{tpu_custom_call.1} parent=79 // pred_fallthru
          _
        // Predicated region
        $region85: #{tpu_custom_call.1} parent=79 // pred_check
          %p568 = pneg %p168
        $region86: #{tpu_custom_call.1} parent=79 // pred_check_branch
          %570 = sbr.rel (%p568) target = $region88
        $region87: #{tpu_custom_call.1} parent=79 // pred_region
          %572 = dma.done [#allocation6], 512
        $region88: #{tpu_custom_call.1} parent=79 // pred_fallthru
          _
        // Predicated region
        $region89: #{tpu_custom_call.1} parent=79 // pred_check
          %p573 = pneg %p210
        $region90: #{tpu_custom_call.1} parent=79 // pred_check_branch
          %575 = sbr.rel (%p573) target = $region92
        $region91: #{tpu_custom_call.1} parent=79 // pred_region
          %577 = dma.done [#allocation6], 512
        $region92: #{tpu_custom_call.1} parent=79 // pred_fallthru
          _
        // Predicated region
        $region93: #{tpu_custom_call.1} parent=79 // pred_check
          %p578 = pneg %p252
        $region94: #{tpu_custom_call.1} parent=79 // pred_check_branch
          %580 = sbr.rel (%p578) target = $region96
        $region95: #{tpu_custom_call.1} parent=79 // pred_region
          %582 = dma.done [#allocation9], 512
        $region96: #{tpu_custom_call.1} parent=79 // pred_fallthru
          _
        // Predicated region
        $region97: #{tpu_custom_call.1} parent=79 // pred_check
          %p583 = pneg %p294
        $region98: #{tpu_custom_call.1} parent=79 // pred_check_branch
          %585 = sbr.rel (%p583) target = $region100
        $region99: #{tpu_custom_call.1} parent=79 // pred_region
          %587 = dma.done [#allocation9], 512
        $region100: #{tpu_custom_call.1} parent=79 // pred_fallthru
          _
        // Predicated region
        $region101: #{tpu_custom_call.1} parent=79 // pred_check
          %p588 = pneg %p315
        $region102: #{tpu_custom_call.1} parent=79 // pred_check_branch
          %590 = sbr.rel (%p588) target = $region104
        $region103: #{tpu_custom_call.1} parent=79 // pred_region
          %592 = dma.done [#allocation12], 512
        $region104: #{tpu_custom_call.1} parent=79 // pred_fallthru
          _
        %p593 = scmp.lt.s32.totalorder %s40, 1
        %s594 = scalar_select %p593, %s40, 1
        %p595 = scmp.lt.s32.totalorder %s41, 0
        %s596 = scalar_select %p595, %s41, 0
        %s597 = sadd.s32 %s596, %s594
        %s598 = smul.addr %s597, 8
        %s599 = scalar_lea.vmem %s0, %s598
        %p600 = pneg %p77
        %p601 = pneg %p74
        %s602 = sand.u32 %s92, 1
        %s603 = scalar_lea.sflag [#allocation3], %s602
        %s604 = sand.u32 %s92, 1
        %s605 = smul.addr %s604, 8
        %s606 = scalar_lea.vmem [#allocation2], %s605
        %p607 = pneg %p105
        %p608 = pneg %p102
        %p609 = pneg %p126
        %p610 = pneg %p123
        %p611 = pneg %p147
        %p612 = pneg %p144
        %p613 = pneg %p168
        %p614 = pneg %p165
        %p615 = pneg %p189
        %p616 = pneg %p186
        %p617 = pneg %p210
        %p618 = pneg %p207
        %p619 = pneg %p231
        %p620 = pneg %p228
        %p621 = pneg %p252
        %p622 = pneg %p249
        %p623 = pneg %p273
        %p624 = pneg %p270
        %p625 = pneg %p294
        %p626 = pneg %p291
        %p627 = pneg %p315
        %p628 = pneg %p312
        %p629 = pneg %p336
        %p630 = pneg %p333
        %p631 = pneg %p357
        %p632 = pneg %p354
        %p633 = pneg %p378
        %p634 = pneg %p375
        %p635 = pneg %p408
        %p636 = pneg %p405
        %s637 = sand.u32 %s395, 1
        %s638 = scalar_lea.sflag [#allocation4], %s637
        %s639 = sand.u32 %s395, 1
        %s640 = smul.addr %s639, 64
        %s641 = scalar_lea.vmem [#allocation13], %s640
        %p642 = scmp.lt.s32.totalorder %s40, 1
        %s643 = scalar_select %p642, %s40, 1
        %p644 = scmp.lt.s32.totalorder %s41, 0
        %s645 = scalar_select %p644, %s41, 0
        %s646 = sadd.s32 %s645, %s643
        %s647 = smul.addr %s646, 8
        %s648 = scalar_lea.vmem %s0, %s647
        %s649 = smul.u32 8, %s41
        %v650 = vld [vmem:[%s648] sm:$0xff]
        %v651 = vld [vmem:[%s562] sm:$0xff]
        %v652 = vld [vmem:[%s2] sm:$0xff]
        %v653 = vld [vmem:[%s2 + $0x8] sm:$0xff]
        %v654 = vld [vmem:[%s2 + $0x10] sm:$0xff]
        %v655 = vld [vmem:[%s2 + $0x18] sm:$0xff]
        %v656 = vld [vmem:[%s3] sm:$0x1]
        %v658 = vperm.slane %v656, 0
        %vm660 = vcmask 261120
        %v662 = vsel %vm660, %v650, 0
        %664 = vmatpush.msra.mxu0 0.0
        %665 = vmatpush.msra.mxu0 0.0
        %666 = vmatpush.msra.mxu0 0.0
        %667 = vmatpush.msra.mxu0 0.0
        %668 = vmatpush.msra.mxu0 0.0
        %669 = vmatpush.msra.mxu0 0.0
        %670 = vmatpush.msra.mxu0 0.0
        %671 = vmatpush.msra.mxu0 0.0
        %672 = vmatpush.msra.mxu0 0.0
        %673 = vmatpush.msra.mxu0 0.0
        %674 = vmatpush.msra.mxu0 0.0
        %675 = vmatpush.msra.mxu0 0.0
        %676 = vmatpush.msra.mxu0 %v655
        %677 = vmatpush.msra.mxu0 %v654
        %678 = vmatpush.msra.mxu0 %v653
        %679 = vmatpush.msra.mxu0 %v652
        %680 = vmatmul.f32.gmra.mxu0 %v662
        %v681 = vpop.f32.mrf.mxu0
        %v682 = vadd.f32 %v658, %v681
        %683 = vdwg.mxu0
        %v684 = vmax.f32 %v682, 0.0
        %v685 = vld [vmem:[#allocation5] sm:$0xff]
        %v686 = vld [vmem:[#allocation5 + $0x8] sm:$0xff]
        %v687 = vld [vmem:[#allocation5 + $0x10] sm:$0xff]
        %v688 = vld [vmem:[#allocation5 + $0x18] sm:$0xff]
        %v689 = vld [vmem:[%s5] sm:$0x1]
        %v691 = vperm.slane %v689, 0
        %v694 = vsel %vm660, %v684, 0
        %696 = vmatpush.msra.mxu0 0.0
        %697 = vmatpush.msra.mxu0 0.0
        %698 = vmatpush.msra.mxu0 0.0
        %699 = vmatpush.msra.mxu0 0.0
        %700 = vmatpush.msra.mxu0 0.0
        %701 = vmatpush.msra.mxu0 0.0
        %702 = vmatpush.msra.mxu0 0.0
        %703 = vmatpush.msra.mxu0 0.0
        %704 = vmatpush.msra.mxu0 0.0
        %705 = vmatpush.msra.mxu0 0.0
        %706 = vmatpush.msra.mxu0 0.0
        %707 = vmatpush.msra.mxu0 0.0
        %708 = vmatpush.msra.mxu0 %v688
        %709 = vmatpush.msra.mxu0 %v687
        %710 = vmatpush.msra.mxu0 %v686
        %711 = vmatpush.msra.mxu0 %v685
        %712 = vmatmul.f32.gmra.mxu0 %v694
        %v713 = vpop.f32.mrf.mxu0
        %v714 = vadd.f32 %v691, %v713
        %715 = vdwg.mxu0
        %v716 = vld [vmem:[#allocation7] sm:$0xff]
        %v717 = vld [vmem:[#allocation7 + $0x8] sm:$0xff]
        %v718 = vld [vmem:[#allocation7 + $0x10] sm:$0xff]
        %v719 = vld [vmem:[#allocation7 + $0x18] sm:$0xff]
        %v720 = vld [vmem:[%s7] sm:$0x1]
        %v722 = vperm.slane %v720, 0
        %v725 = vsel %vm660, %v651, 0
        %727 = vmatpush.msra.mxu0 0.0
        %728 = vmatpush.msra.mxu0 0.0
        %729 = vmatpush.msra.mxu0 0.0
        %730 = vmatpush.msra.mxu0 0.0
        %731 = vmatpush.msra.mxu0 0.0
        %732 = vmatpush.msra.mxu0 0.0
        %733 = vmatpush.msra.mxu0 0.0
        %734 = vmatpush.msra.mxu0 0.0
        %735 = vmatpush.msra.mxu0 0.0
        %736 = vmatpush.msra.mxu0 0.0
        %737 = vmatpush.msra.mxu0 0.0
        %738 = vmatpush.msra.mxu0 0.0
        %739 = vmatpush.msra.mxu0 %v719
        %740 = vmatpush.msra.mxu0 %v718
        %741 = vmatpush.msra.mxu0 %v717
        %742 = vmatpush.msra.mxu0 %v716
        %743 = vmatmul.f32.gmra.mxu0 %v725
        %v744 = vpop.f32.mrf.mxu0
        %v745 = vadd.f32 %v722, %v744
        %746 = vdwg.mxu0
        %v747 = vmax.f32 %v745, 0.0
        %v748 = vld [vmem:[#allocation8] sm:$0xff]
        %v749 = vld [vmem:[#allocation8 + $0x8] sm:$0xff]
        %v750 = vld [vmem:[#allocation8 + $0x10] sm:$0xff]
        %v751 = vld [vmem:[#allocation8 + $0x18] sm:$0xff]
        %v752 = vld [vmem:[%s9] sm:$0x1]
        %v754 = vperm.slane %v752, 0
        %v757 = vsel %vm660, %v747, 0
        %759 = vmatpush.msra.mxu0 0.0
        %760 = vmatpush.msra.mxu0 0.0
        %761 = vmatpush.msra.mxu0 0.0
        %762 = vmatpush.msra.mxu0 0.0
        %763 = vmatpush.msra.mxu0 0.0
        %764 = vmatpush.msra.mxu0 0.0
        %765 = vmatpush.msra.mxu0 0.0
        %766 = vmatpush.msra.mxu0 0.0
        %767 = vmatpush.msra.mxu0 0.0
        %768 = vmatpush.msra.mxu0 0.0
        %769 = vmatpush.msra.mxu0 0.0
        %770 = vmatpush.msra.mxu0 0.0
        %771 = vmatpush.msra.mxu0 %v751
        %772 = vmatpush.msra.mxu0 %v750
        %773 = vmatpush.msra.mxu0 %v749
        %774 = vmatpush.msra.mxu0 %v748
        %775 = vmatmul.f32.gmra.mxu0 %v757
        %v776 = vpop.f32.mrf.mxu0
        %v777 = vadd.f32 %v754, %v776
        %778 = vdwg.mxu0
        %v779 = vld [vmem:[#allocation10] sm:$0xff]
        %v780 = vld [vmem:[#allocation10 + $0x8] sm:$0xff]
        %v781 = vld [vmem:[#allocation10 + $0x10] sm:$0xff]
        %v782 = vld [vmem:[#allocation10 + $0x18] sm:$0xff]
        %v783 = vld [vmem:[%s12] sm:$0x1]
        %v785 = vperm.slane %v783, 0
        %v788 = vsel %vm660, %v714, 0
        %790 = vmatpush.msra.mxu0 0.0
        %791 = vmatpush.msra.mxu0 0.0
        %792 = vmatpush.msra.mxu0 0.0
        %793 = vmatpush.msra.mxu0 0.0
        %794 = vmatpush.msra.mxu0 0.0
        %795 = vmatpush.msra.mxu0 0.0
        %796 = vmatpush.msra.mxu0 0.0
        %797 = vmatpush.msra.mxu0 0.0
        %798 = vmatpush.msra.mxu0 0.0
        %799 = vmatpush.msra.mxu0 0.0
        %800 = vmatpush.msra.mxu0 0.0
        %801 = vmatpush.msra.mxu0 0.0
        %802 = vmatpush.msra.mxu0 %v782
        %803 = vmatpush.msra.mxu0 %v781
        %804 = vmatpush.msra.mxu0 %v780
        %805 = vmatpush.msra.mxu0 %v779
        %806 = vmatmul.f32.gmra.mxu0 %v788
        %v807 = vpop.f32.mrf.mxu0
        %v808 = vadd.f32 %v785, %v807
        %809 = vdwg.mxu0
        %v811 = vsel %vm660, %v777, 0
        %813 = vmatpush.msra.mxu0 0.0
        %814 = vmatpush.msra.mxu0 0.0
        %815 = vmatpush.msra.mxu0 0.0
        %816 = vmatpush.msra.mxu0 0.0
        %817 = vmatpush.msra.mxu0 0.0
        %818 = vmatpush.msra.mxu0 0.0
        %819 = vmatpush.msra.mxu0 0.0
        %820 = vmatpush.msra.mxu0 0.0
        %821 = vmatpush.msra.mxu0 0.0
        %822 = vmatpush.msra.mxu0 0.0
        %823 = vmatpush.msra.mxu0 0.0
        %824 = vmatpush.msra.mxu0 0.0
        %825 = vmatpush.msra.mxu0 %v782
        %826 = vmatpush.msra.mxu0 %v781
        %827 = vmatpush.msra.mxu0 %v780
        %828 = vmatpush.msra.mxu0 %v779
        %829 = vmatmul.f32.gmra.mxu0 %v811
        %v830 = vpop.f32.mrf.mxu0
        %v831 = vadd.f32 0.0, %v830
        %832 = vdwg.mxu0
        %v833 = vrot.slane %v714, 1
        %v834 = vrot.slane %v714, 2
        %v835 = vrot.slane %v714, 3
        %v836 = vrot.slane %v714, 4
        %v837 = vrot.slane %v714, 5
        %v838 = vrot.slane %v714, 6
        %v839 = vrot.slane %v714, 7
        %v840 = vperm.slane %v714, 0
        %v841 = vperm.slane %v833, 0
        %v842 = vperm.slane %v834, 0
        %v843 = vperm.slane %v835, 0
        %v844 = vperm.slane %v836, 0
        %v845 = vperm.slane %v837, 0
        %v846 = vperm.slane %v838, 0
        %v847 = vperm.slane %v839, 0
        %v856 = vmul.f32 %v840, %v777
        %v857 = vmul.f32 %v841, %v777
        %v858 = vmul.f32 %v842, %v777
        %v859 = vmul.f32 %v843, %v777
        %v860 = vmul.f32 %v844, %v777
        %v861 = vmul.f32 %v845, %v777
        %v862 = vmul.f32 %v846, %v777
        %v863 = vmul.f32 %v847, %v777
        %v864 = vld [vmem:[#allocation11] sm:$0xff]
        %v865 = vld [vmem:[#allocation11 + $0x8] sm:$0xff]
        %v866 = vld [vmem:[#allocation11 + $0x10] sm:$0xff]
        %v867 = vld [vmem:[#allocation11 + $0x18] sm:$0xff]
        %v869 = vsel %vm660, %v856, 0
        %v872 = vsel %vm660, %v857, 0
        %v875 = vsel %vm660, %v858, 0
        %v878 = vsel %vm660, %v859, 0
        %v881 = vsel %vm660, %v860, 0
        %v884 = vsel %vm660, %v861, 0
        %v887 = vsel %vm660, %v862, 0
        %v890 = vsel %vm660, %v863, 0
        %892 = vmatpush.msra.mxu0 0.0
        %893 = vmatpush.msra.mxu0 0.0
        %894 = vmatpush.msra.mxu0 0.0
        %895 = vmatpush.msra.mxu0 0.0
        %896 = vmatpush.msra.mxu0 0.0
        %897 = vmatpush.msra.mxu0 0.0
        %898 = vmatpush.msra.mxu0 0.0
        %899 = vmatpush.msra.mxu0 0.0
        %900 = vmatpush.msra.mxu0 0.0
        %901 = vmatpush.msra.mxu0 0.0
        %902 = vmatpush.msra.mxu0 0.0
        %903 = vmatpush.msra.mxu0 0.0
        %904 = vmatpush.msra.mxu0 %v867
        %905 = vmatpush.msra.mxu0 %v866
        %906 = vmatpush.msra.mxu0 %v865
        %907 = vmatpush.msra.mxu0 %v864
        %908 = vmatmul.f32.gmra.mxu0 %v869
        %v909 = vpop.f32.mrf.mxu0
        %v910 = vadd.f32 0.0, %v909
        %911 = vmatmul.f32.gmra.mxu0 %v872
        %v912 = vpop.f32.mrf.mxu0
        %v913 = vadd.f32 0.0, %v912
        %914 = vmatmul.f32.gmra.mxu0 %v875
        %v915 = vpop.f32.mrf.mxu0
        %v916 = vadd.f32 0.0, %v915
        %917 = vmatmul.f32.gmra.mxu0 %v878
        %v918 = vpop.f32.mrf.mxu0
        %v919 = vadd.f32 0.0, %v918
        %920 = vmatmul.f32.gmra.mxu0 %v881
        %v921 = vpop.f32.mrf.mxu0
        %v922 = vadd.f32 0.0, %v921
        %923 = vmatmul.f32.gmra.mxu0 %v884
        %v924 = vpop.f32.mrf.mxu0
        %v925 = vadd.f32 0.0, %v924
        %926 = vmatmul.f32.gmra.mxu0 %v887
        %v927 = vpop.f32.mrf.mxu0
        %v928 = vadd.f32 0.0, %v927
        %929 = vmatmul.f32.gmra.mxu0 %v890
        %v930 = vpop.f32.mrf.mxu0
        %v931 = vadd.f32 0.0, %v930
        %932 = vdwg.mxu0
        %v934 = vrot.slane %v808, 1
        %v935 = vrot.slane %v808, 2
        %v936 = vrot.slane %v808, 3
        %v937 = vrot.slane %v808, 4
        %v938 = vrot.slane %v808, 5
        %v939 = vrot.slane %v808, 6
        %v940 = vrot.slane %v808, 7
        %v941 = vperm.slane %v808, 0
        %v942 = vperm.slane %v934, 0
        %v943 = vperm.slane %v935, 0
        %v944 = vperm.slane %v936, 0
        %v945 = vperm.slane %v937, 0
        %v946 = vperm.slane %v938, 0
        %v947 = vperm.slane %v939, 0
        %v948 = vperm.slane %v940, 0
        %v957 = vadd.f32 %v910, %v941
        %v958 = vadd.f32 %v913, %v942
        %v959 = vadd.f32 %v916, %v943
        %v960 = vadd.f32 %v919, %v944
        %v961 = vadd.f32 %v922, %v945
        %v962 = vadd.f32 %v925, %v946
        %v963 = vadd.f32 %v928, %v947
        %v964 = vadd.f32 %v931, %v948
        %v965 = vadd.f32 %v957, %v831
        %v966 = vadd.f32 %v958, %v831
        %v967 = vadd.f32 %v959, %v831
        %v968 = vadd.f32 %v960, %v831
        %v969 = vadd.f32 %v961, %v831
        %v970 = vadd.f32 %v962, %v831
        %v971 = vadd.f32 %v963, %v831
        %v972 = vadd.f32 %v964, %v831
        %v973 = vmax.f32 %v965, 0.0
        %v974 = vmax.f32 %v966, 0.0
        %v975 = vmax.f32 %v967, 0.0
        %v976 = vmax.f32 %v968, 0.0
        %v977 = vmax.f32 %v969, 0.0
        %v978 = vmax.f32 %v970, 0.0
        %v979 = vmax.f32 %v971, 0.0
        %v980 = vmax.f32 %v972, 0.0
        %v981 = vld [vmem:[%s13] sm:$0xff]
        %v982 = vld [vmem:[%s13 + $0x8] sm:$0xff]
        %v983 = vld [vmem:[%s13 + $0x10] sm:$0xff]
        %v984 = vld [vmem:[%s13 + $0x18] sm:$0xff]
        %v985 = vld [vmem:[%s14] sm:$0x1]
        %v987 = vperm.slane %v985, 0
        %v990 = vsel %vm660, %v973, 0
        %v993 = vsel %vm660, %v974, 0
        %v996 = vsel %vm660, %v975, 0
        %v999 = vsel %vm660, %v976, 0
        %v1002 = vsel %vm660, %v977, 0
        %v1005 = vsel %vm660, %v978, 0
        %v1008 = vsel %vm660, %v979, 0
        %v1011 = vsel %vm660, %v980, 0
        %1013 = vmatpush.msra.mxu0 0.0
        %1014 = vmatpush.msra.mxu0 0.0
        %1015 = vmatpush.msra.mxu0 0.0
        %1016 = vmatpush.msra.mxu0 0.0
        %1017 = vmatpush.msra.mxu0 0.0
        %1018 = vmatpush.msra.mxu0 0.0
        %1019 = vmatpush.msra.mxu0 0.0
        %1020 = vmatpush.msra.mxu0 0.0
        %1021 = vmatpush.msra.mxu0 0.0
        %1022 = vmatpush.msra.mxu0 0.0
        %1023 = vmatpush.msra.mxu0 0.0
        %1024 = vmatpush.msra.mxu0 0.0
        %1025 = vmatpush.msra.mxu0 %v984
        %1026 = vmatpush.msra.mxu0 %v983
        %1027 = vmatpush.msra.mxu0 %v982
        %1028 = vmatpush.msra.mxu0 %v981
        %1029 = vmatmul.f32.gmra.mxu0 %v990
        %v1030 = vpop.f32.mrf.mxu0
        %v1031 = vadd.f32 %v987, %v1030
        %1032 = vmatmul.f32.gmra.mxu0 %v993
        %v1033 = vpop.f32.mrf.mxu0
        %v1034 = vadd.f32 %v987, %v1033
        %1035 = vmatmul.f32.gmra.mxu0 %v996
        %v1036 = vpop.f32.mrf.mxu0
        %v1037 = vadd.f32 %v987, %v1036
        %1038 = vmatmul.f32.gmra.mxu0 %v999
        %v1039 = vpop.f32.mrf.mxu0
        %v1040 = vadd.f32 %v987, %v1039
        %1041 = vmatmul.f32.gmra.mxu0 %v1002
        %v1042 = vpop.f32.mrf.mxu0
        %v1043 = vadd.f32 %v987, %v1042
        %1044 = vmatmul.f32.gmra.mxu0 %v1005
        %v1045 = vpop.f32.mrf.mxu0
        %v1046 = vadd.f32 %v987, %v1045
        %1047 = vmatmul.f32.gmra.mxu0 %v1008
        %v1048 = vpop.f32.mrf.mxu0
        %v1049 = vadd.f32 %v987, %v1048
        %1050 = vmatmul.f32.gmra.mxu0 %v1011
        %v1051 = vpop.f32.mrf.mxu0
        %v1052 = vadd.f32 %v987, %v1051
        %1053 = vdwg.mxu0
        %vm1054 = vcmask 130048
        %1055 = vst.msk [vmem:[%s641] sm:$0xff] %vm1054, %v1031
        %1056 = vst.msk [vmem:[%s641 + $0x8] sm:$0xff] %vm1054, %v1034
        %1057 = vst.msk [vmem:[%s641 + $0x10] sm:$0xff] %vm1054, %v1037
        %1058 = vst.msk [vmem:[%s641 + $0x18] sm:$0xff] %vm1054, %v1040
        %1059 = vst.msk [vmem:[%s641 + $0x20] sm:$0xff] %vm1054, %v1043
        %1060 = vst.msk [vmem:[%s641 + $0x28] sm:$0xff] %vm1054, %v1046
        %1061 = vst.msk [vmem:[%s641 + $0x30] sm:$0xff] %vm1054, %v1049
        %1062 = vst.msk [vmem:[%s641 + $0x38] sm:$0xff] %vm1054, %v1052
        %s1063 = sand.u32 %s395, 1
        %s1064 = scalar_lea.sflag [#allocation4], %s1063
        %s1065 = sand.u32 %s395, 1
        %s1066 = smul.addr %s1065, 64
        %s1067 = scalar_lea.vmem [#allocation13], %s1066
        // Predicated region
        $region105: #{tpu_custom_call.1} parent=79 // pred_check
          %p1068 = pneg %p405
        $region106: #{tpu_custom_call.1} parent=79 // pred_check_branch
          %1070 = sbr.rel (%p1068) target = $region108
        $region107: #{tpu_custom_call.1} parent=79 // pred_region
          %s1071 = smul.u32 8, %s41
          %1073 = vsyncadd %s1064, 0
          %s1074 = sadd.s32 %s42, %s1071
          %s1075 = smul.addr %s40, 8
          %s1076 = sadd.s32 %s1074, %s1075
          %s1077 = smul.addr %s1076, 8
          %s1078 = scalar_lea.hbm %s15, %s1077
          %s1079 = sshll.u32 %s1067, 4
          %s1080 = int_to_ptr.vmem [resolvable:$true] %s1079
          %s1081 = sshll.u32 %s1078, 4
          %s1082 = int_to_ptr.hbm [resolvable:$true] %s1081
          %1087 = dma.vmem_to_hbm [thread:$0]  %s1080, 1024, %s1082, %s1064, 128, 128, 8
        $region108: #{tpu_custom_call.1} parent=79 // pred_fallthru
          _
      $region80: #{tpu_custom_call.1} parent=5 // pred_fallthru
        _
      %p1088 = scmp.le.s32.totalorder 2, %s30
      // Predicated region
      $region109: #{tpu_custom_call.1} parent=5 // pred_check
        %p1089 = pneg %p1088
      $region110: #{tpu_custom_call.1} parent=5 // pred_check_branch
        %1091 = sbr.rel (%p1089) target = $region112
      $region111: #{tpu_custom_call.1} parent=5 // pred_region
        %s1092 = ssub.s32 %s30, 2
        // Predicated region
        $region113: #{tpu_custom_call.1} parent=111 // pred_check
          %p1093 = pneg %p411
        $region114: #{tpu_custom_call.1} parent=111 // pred_check_branch
          %1095 = sbr.rel (%p1093) target = $region116
        $region115: #{tpu_custom_call.1} parent=111 // pred_region
          %s1096 = sand.u32 %s396, 1
          %s1097 = scalar_lea.sflag [#allocation4], %s1096
          %s1098 = sand.u32 %s396, 1
          %s1099 = smul.addr %s1098, 64
          %s1100 = scalar_lea.vmem [#allocation13], %s1099
          %1102 = dma.done %s1097, 1024
        $region116: #{tpu_custom_call.1} parent=111 // pred_fallthru
          _
      $region112: #{tpu_custom_call.1} parent=5 // pred_fallthru
        _
    $region6: #{tpu_custom_call.1} parent=1 // loop_footer
      %s34 = sadd.s32 1, %s30
    $region7: #{tpu_custom_call.1} parent=1 // loop_footer_branch
      %29 = sbr.rel target = $region3
    $region8: #{tpu_custom_call.1} parent=1 // loop_exit
      _
    %1103 = vsyncpa [#allocation3], 1
    %s1104 = scalar_lea.sflag [#allocation3], 1
    %1105 = vsyncpa %s1104, 1
    %1106 = vsyncpa [#allocation6], 1
    %1107 = vsyncpa [#allocation9], 1
    %1108 = vsyncpa [#allocation12], 1
    %1109 = vsyncpa [#allocation4], 1
    %s1110 = scalar_lea.sflag [#allocation4], 1
    %1111 = vsyncpa %s1110, 1

</llo_original>
